<compile_context>
chip_gen: v7x
topology: tpu7x:2x2x1
jax: 0.10.0
libtpu: 0.0.40
codegen_flags: <defaults>
</compile_context>

<pallas_src>
import functools

import jax
import jax.numpy as jnp
from jax.experimental import pallas as pl
from jax.experimental.pallas import tpu as pltpu


def _focal_loss_kernel(pred_ref, label_ref, out_ref, acc_ref, *,
                       gamma, alpha, tiles_per_split, block_rows,
                       valid_rows, need_mask):
    j = pl.program_id(1)

    @pl.when(j == 0)
    def _():
        acc_ref[...] = jnp.zeros_like(acc_ref)

    x = pred_ref[...].astype(jnp.float32)
    y = label_ref[...].astype(jnp.float32)

    # One EUP exp shared by the numerically stable BCE-with-logits and sigmoid.
    e = jnp.exp(-jnp.abs(x))                           # exp(-|x|) in (0, 1]
    den = 1.0 + e
    bce = jnp.maximum(x, 0.0) - x * y + jnp.log(den)   # stable BCE w/ logits
    r = pl.reciprocal(den, approx=True)                # EUP, no Newton divide
    p = jnp.where(x >= 0.0, r, e * r)                  # sigmoid(x)

    # z = 1 - p_t, with p_t = y*p + (1-y)*(1-p), algebraically simplified.
    z = p + y - 2.0 * (p * y)
    if gamma == 1.5:
        mod = z * jnp.sqrt(z)            # z**1.5, exact 0 at z == 0, no NaN
    elif gamma == 2.0:
        mod = z * z
    elif gamma == 1.0:
        mod = z
    elif gamma == 0.0:
        mod = None
    else:
        mod = z ** gamma                 # generic fallback (gamma > 0)
    loss = bce if mod is None else bce * mod
    if alpha > 0:
        # y*alpha + (1-y)*(1-alpha) == (1-alpha) + y*(2*alpha - 1)
        loss = loss * ((1.0 - alpha) + y * (2.0 * alpha - 1.0))

    if need_mask:
        # Zero rows past the real array: the partial tail block and any
        # phantom tile created by the megacore round-up (whose block index is
        # clamped in the index_map, so it re-reads valid data -> mask it out).
        t = pl.program_id(0) * tiles_per_split + j
        row = t * block_rows + jax.lax.broadcasted_iota(jnp.int32, loss.shape, 0)
        loss = jnp.where(row < valid_rows, loss, 0.0)

    # Fold (block_rows, lanes) -> (8, lanes) using only VPU adds; the single
    # cross-lane XLU reduce happens once per split, below.
    br, lanes = loss.shape
    acc_ref[...] += loss.reshape(br // 8, 8, lanes).sum(axis=0)

    @pl.when(j == pl.num_programs(1) - 1)
    def _():
        out_ref[...] = jnp.sum(acc_ref[...]).reshape(1, 1, 1)


def _device_kind():
    try:
        return jax.devices()[0].device_kind.lower()
    except Exception:
        return ""


def focal_loss(pred, label, gamma=1.5, alpha=0.25, *, block_rows=None):
    """Pallas FocalLoss.forward(pred, label, gamma, alpha) == loss.mean(1).sum().

    Mem-bound kernel: pass pred/label in their native narrow dtype (e.g. bf16)
    when available — the kernel upcasts to f32 internally and this wrapper
    never pads or casts the inputs (no extra HBM pass).
    """
    assert pred.shape == label.shape and pred.ndim == 2
    if gamma not in (0.0, 1.0, 1.5, 2.0) and gamma <= 0:
        raise ValueError("non-special gamma must be > 0 (z**gamma at z == 0).")

    n, c = pred.shape
    total = n * c
    LANES, SUB = 128, 8

    def _round_up(v, m):
        return (v + m - 1) // m * m

    # ---- generation-aware tuning -------------------------------------------
    kind = _device_kind()
    is_v5e = ("v5 lite" in kind) or ("v5e" in kind)
    is_v7 = "v7" in kind
    if is_v5e:                       # 128 MiB physical, small scoped default
        default_rows, vmem_limit = 4096, 96 << 20
    elif is_v7:                      # 64 MiB physical per TensorCore
        default_rows, vmem_limit = 8192, 48 << 20
    elif "v6" in kind:               # 128 MiB physical
        default_rows, vmem_limit = 8192, 96 << 20
    else:                            # unknown part: stay conservative
        default_rows, vmem_limit = 2048, None
    num_cores = 2 if (is_v7 or "v4" in kind or "v5p" in kind) else 1
    if block_rows is None:
        block_rows = default_rows

    # ---- zero-copy lane-dense view (no jnp.pad) ------------------------------
    if total % LANES == 0:
        rows, lanes = total // LANES, LANES           # free reshape-only view
        pred2d = pred.reshape(rows, LANES)
        label2d = label.reshape(rows, LANES)
    else:
        rows, lanes = n, c                            # full-C last dim is legal
        pred2d, label2d = pred, label

    block_rows = _round_up(max(SUB, min(block_rows, rows)), SUB)
    n_tiles = pl.cdiv(rows, block_rows)
    last_tile = n_tiles - 1

    # 2-way megacore split only on 2-TC parts and only with >=2 tiles per core.
    num_splits = 2 if (num_cores >= 2 and n_tiles >= 4) else 1
    tiles_per_split = _round_up(n_tiles, num_splits) // num_splits
    need_mask = (num_splits * tiles_per_split * block_rows) > rows

    kernel = functools.partial(
        _focal_loss_kernel, gamma=gamma, alpha=alpha,
        tiles_per_split=tiles_per_split, block_rows=block_rows,
        valid_rows=rows, need_mask=need_mask)

    def in_map(p, j):
        # Clamp phantom tiles (from the split round-up) onto the last real
        # tile; their contribution is zeroed by the in-kernel row mask.
        return (jnp.minimum(p * tiles_per_split + j, last_tile), 0)

    partials = pl.pallas_call(
        kernel,
        out_shape=jax.ShapeDtypeStruct((num_splits, 1, 1), jnp.float32),
        grid_spec=pltpu.PrefetchScalarGridSpec(
            num_scalar_prefetch=0,
            grid=(num_splits, tiles_per_split),
            in_specs=[
                pl.BlockSpec((block_rows, lanes), in_map),
                pl.BlockSpec((block_rows, lanes), in_map),
            ],
            out_specs=pl.BlockSpec((1, 1, 1), lambda p, j: (p, 0, 0)),
            scratch_shapes=[pltpu.VMEM((SUB, lanes), jnp.float32)],
        ),
        compiler_params=pltpu.CompilerParams(
            dimension_semantics=("parallel", "arbitrary"),
            vmem_limit_bytes=vmem_limit,
        ),
    )(pred2d, label2d)

    # loss.mean(1).sum() == sum(loss) / C
    return (jnp.sum(partials) / jnp.float32(c)).astype(jnp.float32)


def _focal_loss_ref(pred, label, gamma=1.5, alpha=0.25):
    """Pure-JAX reference mirroring the PyTorch module."""
    x = pred.astype(jnp.float32)
    y = label.astype(jnp.float32)
    bce = jnp.maximum(x, 0.0) - x * y + jnp.log1p(jnp.exp(-jnp.abs(x)))
    p = jax.nn.sigmoid(x)
    p_t = y * p + (1.0 - y) * (1.0 - p)
    loss = bce * (1.0 - p_t) ** gamma
    if alpha > 0:
        loss = loss * (y * alpha + (1.0 - y) * (1.0 - alpha))
    return loss.mean(axis=1).sum()


if __name__ == "__main__":
    key = jax.random.PRNGKey(0)
    k1, k2, k3, k4, k5, k6 = jax.random.split(key, 6)

    # 1) Lane-aligned shape: zero-copy fast path, single tile, no masking.
    pred1 = jax.random.normal(k1, (16, 128), dtype=jnp.float32)
    label1 = (jax.random.uniform(k2, (16, 128)) < 0.1).astype(jnp.float32)
    out1 = jax.block_until_ready(focal_loss(pred1, label1, gamma=1.5, alpha=0.25))
    ref1 = _focal_loss_ref(pred1, label1, gamma=1.5, alpha=0.25)
    assert jnp.allclose(out1, ref1, rtol=1e-3, atol=1e-6), (out1, ref1)

    # 2) Non-lane-aligned C=85 (YOLO-like): full-C blocks + tail-row masking.
    pred2 = jax.random.normal(k3, (12, 85), dtype=jnp.float32)
    label2 = (jax.random.uniform(k4, (12, 85)) < 0.1).astype(jnp.float32)
    out2 = jax.block_until_ready(focal_loss(pred2, label2, gamma=1.5, alpha=0.25))
    ref2 = _focal_loss_ref(pred2, label2, gamma=1.5, alpha=0.25)
    assert jnp.allclose(out2, ref2, rtol=1e-3, atol=1e-6), (out2, ref2)

    # 3) Multi-tile reduction with a partial last block (small block on purpose).
    pred3 = jax.random.normal(k5, (100, 128), dtype=jnp.float32)
    label3 = (jax.random.uniform(k6, (100, 128)) < 0.1).astype(jnp.float32)
    out3 = jax.block_until_ready(focal_loss(pred3, label3, block_rows=64))
    ref3 = _focal_loss_ref(pred3, label3)
    assert jnp.allclose(out3, ref3, rtol=1e-3, atol=1e-6), (out3, ref3)

    # 4) bf16 caller contract (kernel upcasts; wrapper does not cast/copy).
    pred4 = pred1.astype(jnp.bfloat16)
    label4 = label1.astype(jnp.bfloat16)
    out4 = jax.block_until_ready(focal_loss(pred4, label4))
    ref4 = _focal_loss_ref(pred4.astype(jnp.float32), label4.astype(jnp.float32))
    assert jnp.allclose(out4, ref4, rtol=2e-3, atol=1e-6), (out4, ref4)

    print("KERNEL_OK")
</pallas_src>

<mosaic_0001>
module attributes {stable_mosaic.version = 11 : i64} {
  func.func @_focal_loss_kernel(%arg0: i32, %arg1: i32, %arg2: memref<16x128xf32, #tpu.memory_space<vmem>>, %arg3: memref<16x128xf32, #tpu.memory_space<vmem>>, %arg4: memref<1x1x1xf32, #tpu.memory_space<vmem>>, %arg5: memref<8x128xf32, #tpu.memory_space<vmem>>) attributes {dimension_semantics = [#tpu.dimension_semantics<parallel>, #tpu.dimension_semantics<arbitrary>], iteration_bounds = array<i64: 1, 1>, scalar_prefetch = 0 : i64, scratch_operands = 1 : i64, tpu.core_type = #tpu.core_type<tc>, window_params = [{transform_indices = @transform_0, window_bounds = array<i64: 16, 128>}, {transform_indices = @transform_1, window_bounds = array<i64: 16, 128>}, {transform_indices = @transform_2, window_bounds = array<i64: 1, 1, 1>}]} {
    %c0_i32 = arith.constant 0 : i32
    %0 = arith.cmpi eq, %arg1, %c0_i32 : i32
    %1 = arith.extui %0 : i1 to i32
    %c0_i32_0 = arith.constant 0 : i32
    %2 = arith.cmpi ne, %1, %c0_i32_0 : i32
    scf.if %2 {
      %cst_17 = arith.constant 0.000000e+00 : f32
      %43 = vector.broadcast %cst_17 : f32 to vector<8x128xf32>
      %c0_18 = arith.constant 0 : index
      %c0_19 = arith.constant 0 : index
      %44 = vector.load %arg5[%c0_18, %c0_19] : memref<8x128xf32, #tpu.memory_space<vmem>>, vector<8x128xf32>
      tpu.vector_store %arg5[%c0_18, %c0_19], %43 {strides = array<i32>} : memref<8x128xf32, #tpu.memory_space<vmem>>, vector<8x128xf32>,
    } else {
    }
    %c0 = arith.constant 0 : index
    %c0_1 = arith.constant 0 : index
    %3 = vector.load %arg2[%c0, %c0_1] : memref<16x128xf32, #tpu.memory_space<vmem>>, vector<16x128xf32>
    %c0_2 = arith.constant 0 : index
    %c0_3 = arith.constant 0 : index
    %4 = vector.load %arg3[%c0_2, %c0_3] : memref<16x128xf32, #tpu.memory_space<vmem>>, vector<16x128xf32>
    %5 = math.absf %3 : vector<16x128xf32>
    %cst = arith.constant 0.000000e+00 : f32
    %6 = vector.broadcast %cst : f32 to vector<16x128xf32>
    %7 = arith.subf %6, %5 : vector<16x128xf32>
    %8 = math.exp %7 : vector<16x128xf32>
    %cst_4 = arith.constant 1.000000e+00 : f32
    %9 = vector.broadcast %cst_4 : f32 to vector<16x128xf32>
    %10 = arith.addf %9, %8 : vector<16x128xf32>
    %cst_5 = arith.constant 0.000000e+00 : f32
    %11 = vector.broadcast %cst_5 : f32 to vector<16x128xf32>
    %12 = arith.maximumf %3, %11 : vector<16x128xf32>
    %13 = arith.mulf %3, %4 : vector<16x128xf32>
    %14 = arith.subf %12, %13 : vector<16x128xf32>
    %15 = math.log %10 : vector<16x128xf32>
    %16 = arith.addf %14, %15 : vector<16x128xf32>
    %17 = tpu.reciprocal %10 {approx = true} : vector<16x128xf32> -> vector<16x128xf32>
    %cst_6 = arith.constant 0.000000e+00 : f32
    %18 = vector.broadcast %cst_6 : f32 to vector<16x128xf32>
    %19 = arith.cmpf oge, %3, %18 : vector<16x128xf32>
    %20 = arith.mulf %8, %17 : vector<16x128xf32>
    %21 = arith.select %19, %17, %20 : vector<16x128xi1>, vector<16x128xf32>
    %22 = arith.addf %21, %4 : vector<16x128xf32>
    %23 = arith.mulf %21, %4 : vector<16x128xf32>
    %cst_7 = arith.constant 2.000000e+00 : f32
    %24 = vector.broadcast %cst_7 : f32 to vector<16x128xf32>
    %25 = arith.mulf %24, %23 : vector<16x128xf32>
    %26 = arith.subf %22, %25 : vector<16x128xf32>
    %27 = math.sqrt %26 : vector<16x128xf32>
    %28 = arith.mulf %26, %27 : vector<16x128xf32>
    %29 = arith.mulf %16, %28 : vector<16x128xf32>
    %cst_8 = arith.constant -5.000000e-01 : f32
    %30 = vector.broadcast %cst_8 : f32 to vector<16x128xf32>
    %31 = arith.mulf %4, %30 : vector<16x128xf32>
    %cst_9 = arith.constant 7.500000e-01 : f32
    %32 = vector.broadcast %cst_9 : f32 to vector<16x128xf32>
    %33 = arith.addf %32, %31 : vector<16x128xf32>
    %34 = arith.mulf %29, %33 : vector<16x128xf32>
    %c0_10 = arith.constant 0 : index
    %c0_11 = arith.constant 0 : index
    %35 = vector.load %arg5[%c0_10, %c0_11] : memref<8x128xf32, #tpu.memory_space<vmem>>, vector<8x128xf32>
    %36 = vector.shape_cast %34 : vector<16x128xf32> to vector<2x8x128xf32>
    %cst_12 = arith.constant dense<0.000000e+00> : vector<8x128xf32>
    %37 = vector.multi_reduction <add>, %36, %cst_12 [0] : vector<2x8x128xf32> to vector<8x128xf32>
    %38 = arith.addf %35, %37 : vector<8x128xf32>
    %c0_13 = arith.constant 0 : index
    %c0_14 = arith.constant 0 : index
    %39 = vector.load %arg5[%c0_13, %c0_14] : memref<8x128xf32, #tpu.memory_space<vmem>>, vector<8x128xf32>
    tpu.vector_store %arg5[%c0_13, %c0_14], %38 {strides = array<i32>} : memref<8x128xf32, #tpu.memory_space<vmem>>, vector<8x128xf32>,
    %c0_i32_15 = arith.constant 0 : i32
    %40 = arith.cmpi eq, %arg1, %c0_i32_15 : i32
    %41 = arith.extui %40 : i1 to i32
    %c0_i32_16 = arith.constant 0 : i32
    %42 = arith.cmpi ne, %41, %c0_i32_16 : i32
    scf.if %42 {
      %c0_17 = arith.constant 0 : index
      %c0_18 = arith.constant 0 : index
      %43 = vector.load %arg5[%c0_17, %c0_18] : memref<8x128xf32, #tpu.memory_space<vmem>>, vector<8x128xf32>
      %44 = vector.shape_cast %43 : vector<8x128xf32> to vector<1x8x128xf32>
      %cst_19 = arith.constant dense<0.000000e+00> : vector<1xf32>
      %45 = vector.multi_reduction <add>, %44, %cst_19 [1, 2] : vector<1x8x128xf32> to vector<1xf32>
      %46 = vector.shape_cast %45 : vector<1xf32> to vector<1x1x1xf32>
      %47 = vector.extract %46[0, 0, 0] : f32 from vector<1x1x1xf32>
      %48 = vector.broadcast %47 : f32 to vector<1x1x1xf32>
      %c0_20 = arith.constant 0 : index
      %c0_21 = arith.constant 0 : index
      %c0_22 = arith.constant 0 : index
      %49 = vector.load %arg4[%c0_20, %c0_21, %c0_22] : memref<1x1x1xf32, #tpu.memory_space<vmem>>, vector<1x1x1xf32>
      tpu.vector_store %arg4[%c0_20, %c0_21, %c0_22], %48 {strides = array<i32>} : memref<1x1x1xf32, #tpu.memory_space<vmem>>, vector<1x1x1xf32>,
    } else {
    }
    return
  }
  func.func @transform_0(%arg0: i32, %arg1: i32) -> (i32, i32) {
    %c1_i32 = arith.constant 1 : i32
    %0 = arith.muli %arg0, %c1_i32 : i32
    %1 = arith.addi %0, %arg1 : i32
    %c0_i32 = arith.constant 0 : i32
    %2 = arith.minsi %1, %c0_i32 : i32
    %c0_i32_0 = arith.constant 0 : i32
    %c0_i32_1 = arith.constant 0 : i32
    return %2, %c0_i32_0 : i32, i32
  }
  func.func @transform_1(%arg0: i32, %arg1: i32) -> (i32, i32) {
    %c1_i32 = arith.constant 1 : i32
    %0 = arith.muli %arg0, %c1_i32 : i32
    %1 = arith.addi %0, %arg1 : i32
    %c0_i32 = arith.constant 0 : i32
    %2 = arith.minsi %1, %c0_i32 : i32
    %c0_i32_0 = arith.constant 0 : i32
    %c0_i32_1 = arith.constant 0 : i32
    return %2, %c0_i32_0 : i32, i32
  }
  func.func @transform_2(%arg0: i32, %arg1: i32) -> (i32, i32, i32) {
    %c0_i32 = arith.constant 0 : i32
    %c0_i32_0 = arith.constant 0 : i32
    %c0_i32_1 = arith.constant 0 : i32
    return %arg0, %c0_i32, %c0_i32_0 : i32, i32, i32
  }
}

</mosaic_0001>

<llo_original>
// kernel: tpu_custom_call.1
$region0: #{tpu_custom_call.1}
  #allocation0 [shape = 'u32[]', space=smem, size = 0x4, offset = 0x4, fixed_abs, tag = 'smem constant byte address 0x4 - core index']
  #allocation1 [shape = 'u32[144,128]{1,0:T(1,128)}', space=vmem, size = 0x12000, scoped, tag = 'internal scratch']
  #allocation2 [shape = 'f32[8,128]{1,0:T(8,128)}', space=vmem, size = 0x1000, scoped, tag = 'scratch operand']
  %s0 = inlined_call_operand.hbm [shape: f32[16,128], index: 0, kind: input, shape index: {}]
  %s1 = inlined_call_operand.hbm [shape: f32[16,128], index: 1, kind: input, shape index: {}]
  %s2 = inlined_call_operand.hbm [shape: f32[1,1,1], index: 2, kind: output, shape index: {}]
  %s3 = sld [smem:[#allocation0]]
  $region34: #{tpu_custom_call.1} parent=0
    _
  %s5 = ssub.s32 1, %s3
  %s6 = scalar_select 0, %s5, %s3
  $region1: #{tpu_custom_call.1} parent=0
    #allocation3 [shape = 'u8[8192]{0}', space=vmem, size = 0x2000, scoped, tag = 'input window, operand 0, single buffered']
    #allocation4 [shape = 's32[1]{0}', space=sflag, size = 0x4, scoped, tag = 'scoped memory for tpu_custom_call.1']
    #allocation5 [shape = 's32[1]{0}', space=sflag, size = 0x4, scoped, tag = 'scoped memory for tpu_custom_call.1']
    #allocation6 [shape = 'u8[8192]{0}', space=vmem, size = 0x2000, scoped, tag = 'input window, operand 1, single buffered']
    #allocation7 [shape = 's32[1]{0}', space=sflag, size = 0x4, scoped, tag = 'scoped memory for tpu_custom_call.1']
    #allocation8 [shape = 'u8[512]{0}', space=vmem, size = 0x400, scoped, tag = 'output window, operand 0, single buffered']
    %7 = vsyncpa [#allocation4], 0
    %8 = vsyncpa [#allocation7], 0
    %9 = vsyncpa [#allocation5], 0
    // Predicated region
    $region2: #{tpu_custom_call.1} parent=1 // pred_check
      _
    $region3: #{tpu_custom_call.1} parent=1 // pred_check_branch
      %11 = sbr.rel (0) target = $region5
    $region4: #{tpu_custom_call.1} parent=1 // pred_region
      %s12 = sadd.s32 0, 0
      %p13 = scmp.lt.s32.totalorder %s12, 0
      %s14 = scalar_select %p13, %s12, 0
      %s15 = smul.u32 2, %s14
      %s17 = ssub.s32 256, 256
      %18 = vsyncadd [#allocation4], %s17
      %s19 = smul.addr %s15, 128
      %s20 = scalar_lea.hbm %s0, %s19
      %s21 = sshll.u32 [#allocation3], 4
      %s22 = int_to_ptr.vmem [resolvable:$true] %s21
      %27 = dma.hbm_to_vmem [thread:$0]  %s20, 256, %s22, [#allocation4], 128, 128, 8
    $region5: #{tpu_custom_call.1} parent=1 // pred_fallthru
      _
    // Predicated region
    $region6: #{tpu_custom_call.1} parent=1 // pred_check
      _
    $region7: #{tpu_custom_call.1} parent=1 // pred_check_branch
      %29 = sbr.rel (0) target = $region9
    $region8: #{tpu_custom_call.1} parent=1 // pred_region
      %s30 = sadd.s32 0, 0
      %p31 = scmp.lt.s32.totalorder %s30, 0
      %s32 = scalar_select %p31, %s30, 0
      %s33 = smul.u32 2, %s32
      %s35 = ssub.s32 256, 256
      %36 = vsyncadd [#allocation7], %s35
      %s37 = smul.addr %s33, 128
      %s38 = scalar_lea.hbm %s1, %s37
      %s39 = sshll.u32 [#allocation6], 4
      %s40 = int_to_ptr.vmem [resolvable:$true] %s39
      %45 = dma.hbm_to_vmem [thread:$0]  %s38, 256, %s40, [#allocation7], 128, 128, 8
    $region9: #{tpu_custom_call.1} parent=1 // pred_fallthru
      _
    // Predicated region
    $region10: #{tpu_custom_call.1} parent=1 // pred_check
      _
    $region11: #{tpu_custom_call.1} parent=1 // pred_check_branch
      %47 = sbr.rel (0) target = $region13
    $region12: #{tpu_custom_call.1} parent=1 // pred_region
      %48 = dma.done [#allocation4], 256
    $region13: #{tpu_custom_call.1} parent=1 // pred_fallthru
      _
    // Predicated region
    $region14: #{tpu_custom_call.1} parent=1 // pred_check
      _
    $region15: #{tpu_custom_call.1} parent=1 // pred_check_branch
      %50 = sbr.rel (0) target = $region17
    $region16: #{tpu_custom_call.1} parent=1 // pred_region
      %51 = dma.done [#allocation7], 256
    $region17: #{tpu_custom_call.1} parent=1 // pred_fallthru
      _
    %s52 = sadd.s32 0, 0
    %p53 = scmp.lt.s32.totalorder %s52, 0
    %s54 = scalar_select %p53, %s52, 0
    %s55 = smul.u32 2, %s54
    %s56 = sadd.s32 0, 0
    %p57 = scmp.lt.s32.totalorder %s56, 0
    %s58 = scalar_select %p57, %s56, 0
    %s59 = smul.u32 2, %s58
    %p60 = scmp.eq.s32.totalorder 0, 0
    // Predicated region
    $region18: #{tpu_custom_call.1} parent=1 // pred_check
      %p61 = pneg %p60
    $region19: #{tpu_custom_call.1} parent=1 // pred_check_branch
      %63 = sbr.rel (%p61) target = $region21
    $region20: #{tpu_custom_call.1} parent=1 // pred_region
      %64 = vst [vmem:[#allocation2] sm:$0xff] 0.0
    $region21: #{tpu_custom_call.1} parent=1 // pred_fallthru
      _
    %v65 = vld [vmem:[#allocation3] sm:$0xff]
    %v66 = vld [vmem:[#allocation3 + $0x8] sm:$0xff]
    %v67 = vld [vmem:[#allocation6] sm:$0xff]
    %v68 = vld [vmem:[#allocation6 + $0x8] sm:$0xff]
    %v69 = vand.u32 2147483647, %v65
    %v70 = vand.u32 2147483647, %v66
    %v71 = vsub.f32 0.0, %v69
    %v72 = vsub.f32 0.0, %v70
    %v73 = vmul.f32 %v71, 1.442695
    %v74 = vpow.pop %v73
    %v75 = vmul.f32 %v72, 1.442695
    %v76 = vpow.pop %v75
    %v77 = vadd.f32 %v74, 1.0
    %v78 = vadd.f32 %v76, 1.0
    %v79 = vmax.f32 %v65, 0.0
    %v80 = vmax.f32 %v66, 0.0
    %v81 = vmul.f32 %v65, %v67
    %v82 = vmul.f32 %v66, %v68
    %v83 = vsub.f32 %v79, %v81
    %v84 = vsub.f32 %v80, %v82
    %v85 = vlog2.pop %v77
    %v86 = vmul.f32 %v85, 0.6931472
    %v87 = vlog2.pop %v78
    %v88 = vmul.f32 %v87, 0.6931472
    %v89 = vadd.f32 %v83, %v86
    %v90 = vadd.f32 %v84, %v88
    %v91 = vrcp.pop %v77
    %v92 = vrcp.pop %v78
    %vm93 = vcmp.ge.f32.partialorder %v65, 0.0
    %vm94 = vcmp.ge.f32.partialorder %v66, 0.0
    %v95 = vmul.f32 %v74, %v91
    %v96 = vmul.f32 %v76, %v92
    %v97 = vsel %vm93, %v91, %v95
    %v98 = vsel %vm94, %v92, %v96
    %v99 = vadd.f32 %v97, %v67
    %v100 = vadd.f32 %v98, %v68
    %v101 = vmul.f32 %v97, %v67
    %v102 = vmul.f32 %v98, %v68
    %v103 = vmul.f32 %v101, 2.0
    %v104 = vmul.f32 %v102, 2.0
    %v105 = vsub.f32 %v99, %v103
    %v106 = vsub.f32 %v100, %v104
    %v107 = vrsqrt.pop %v105
    %v108 = vmul.f32 %v105, %v107
    %vm109 = vcmp.eq.f32.partialorder %v105, inf
    %v110 = vsel %vm109, %v105, %v108
    %vm111 = vcmp.eq.f32.partialorder %v105, 0.0
    %v112 = vand.u32 %v105, 2147483648
    %v113 = vsel %vm111, %v112, %v110
    %v114 = vrsqrt.pop %v106
    %v115 = vmul.f32 %v106, %v114
    %vm116 = vcmp.eq.f32.partialorder %v106, inf
    %v117 = vsel %vm116, %v106, %v115
    %vm118 = vcmp.eq.f32.partialorder %v106, 0.0
    %v119 = vand.u32 %v106, 2147483648
    %v120 = vsel %vm118, %v119, %v117
    %v121 = vmul.f32 %v105, %v113
    %v122 = vmul.f32 %v106, %v120
    %v123 = vmul.f32 %v89, %v121
    %v124 = vmul.f32 %v90, %v122
    %v125 = vmul.f32 %v67, -0.5
    %v126 = vmul.f32 %v68, -0.5
    %v127 = vadd.f32 %v125, 0.75
    %v128 = vadd.f32 %v126, 0.75
    %v129 = vmul.f32 %v123, %v127
    %v130 = vmul.f32 %v124, %v128
    %v131 = vld [vmem:[#allocation2] sm:$0xff]
    %v132 = vadd.f32 %v129, %v130
    %v133 = vadd.f32 %v131, %v132
    %134 = vst [vmem:[#allocation2] sm:$0xff] %v133
    // Predicated region
    $region22: #{tpu_custom_call.1} parent=1 // pred_check
      %p135 = pneg %p60
    $region23: #{tpu_custom_call.1} parent=1 // pred_check_branch
      %137 = sbr.rel (%p135) target = $region25
    $region24: #{tpu_custom_call.1} parent=1 // pred_region
      %v138 = vld [vmem:[#allocation2] sm:$0xff]
      %139 = vadd.xlane.f32.xlu0 %v138
      %v140 = vpop.xlane.xlu0 %139
      %v141 = vrot.slane %v140, 4
      %v142 = vadd.f32 %v140, %v141
      %v143 = vrot.slane %v142, 2
      %v144 = vadd.f32 %v142, %v143
      %v145 = vrot.slane %v144, 1
      %v146 = vadd.f32 %v144, %v145
      %s147 = vtos %v146
      %v148 = vstv %s147
      %vm149 = vcmask 0
      %150 = vst.msk [vmem:[#allocation8] sm:$0x1] %vm149, %v148
    $region25: #{tpu_custom_call.1} parent=1 // pred_fallthru
      _
    // Predicated region
    $region26: #{tpu_custom_call.1} parent=1 // pred_check
      _
    $region27: #{tpu_custom_call.1} parent=1 // pred_check_branch
      %152 = sbr.rel (0) target = $region29
    $region28: #{tpu_custom_call.1} parent=1 // pred_region
      %s154 = ssub.s32 16, 16
      %155 = vsyncadd [#allocation5], %s154
      %s157 = sshll.u32 [#allocation8], 4
      %s158 = int_to_ptr.vmem [resolvable:$true] %s157
      %160 = dma.vmem_to_hbm [thread:$0]  %s158, 16, %s2, [#allocation5]
    $region29: #{tpu_custom_call.1} parent=1 // pred_fallthru
      _
    // Predicated region
    $region30: #{tpu_custom_call.1} parent=1 // pred_check
      _
    $region31: #{tpu_custom_call.1} parent=1 // pred_check_branch
      %162 = sbr.rel (0) target = $region33
    $region32: #{tpu_custom_call.1} parent=1 // pred_region
      %163 = dma.done [#allocation5], 16
    $region33: #{tpu_custom_call.1} parent=1 // pred_fallthru
      _
    %164 = vsyncpa [#allocation4], 1
    %165 = vsyncpa [#allocation7], 1
    %166 = vsyncpa [#allocation5], 1

</llo_original>
